<compile_context>
chip_gen: v5e
topology: v5e:2x2
jax: 0.10.0
libtpu: 0.0.40
codegen_flags: <defaults>
</compile_context>

<pallas_src>
import functools

import jax
import jax.numpy as jnp
from jax.experimental import pallas as pl
from jax.experimental.pallas import tpu as pltpu

_PACK = 8  # logical rows packed per lane-dense row (8 * out_dim=16 -> 128 lanes)


def _mlp_packed_kernel(x_ref, w1_ref, b1_ref, w2_ref, b2_ref, o_ref):
    # fc1 (8-way block-diagonal packed): x @ W1p + b1p -> ReLU
    x = x_ref[...].astype(jnp.float32)
    h = jnp.dot(x, w1_ref[...], preferred_element_type=jnp.float32)
    h = jnp.maximum(h + b1_ref[...], 0.0)          # b1p is (1, 8*hidden), broadcasts
    # fc2 (8-way block-diagonal packed): h @ W2p + b2p
    y = jnp.dot(h, w2_ref[...], preferred_element_type=jnp.float32)
    o_ref[...] = (y + b2_ref[...]).astype(o_ref.dtype)


def _round_up(n, m):
    return ((n + m - 1) // m) * m


@functools.partial(jax.jit, static_argnames=("tile_b",))
def net_relu_forward(x, w1, b1, w2, b2, *, tile_b=1024):
    """x: [B, inputNum]; w1: [inputNum, hidden]; b1: [hidden];
       w2: [hidden, outputNum]; b2: [outputNum]  -> [B, outputNum] float32."""
    B, in_dim = x.shape
    hidden = w1.shape[1]
    out_dim = w2.shape[1]
    pack = _PACK

    # --- lane-dense row packing (wrapper-side, essentially free) ------------
    B_pad = _round_up(B, pack)                 # tiny pad (<=7 rows) only if ragged
    if B_pad != B:
        x = jnp.pad(x, ((0, B_pad - B), (0, 0)))
    Bp = B_pad // pack
    xp = x.astype(jnp.float32).reshape(Bp, pack * in_dim)   # free row-major reshape

    eye = jnp.eye(pack, dtype=jnp.float32)
    w1p = jnp.kron(eye, w1.astype(jnp.float32))              # (8*in, 8*hidden)
    w2p = jnp.kron(eye, w2.astype(jnp.float32))              # (8*hidden, 8*out)
    b1p = jnp.tile(b1.astype(jnp.float32), pack).reshape(1, pack * hidden)
    b2p = jnp.tile(b2.astype(jnp.float32), pack).reshape(1, pack * out_dim)

    # --- batch tile (in packed rows) ----------------------------------------
    # Target tile_b logical rows per grid step, but keep >=2 grid steps when the
    # batch allows so ("parallel",) can shard across v7x's two TensorCores.
    tbp_cap = max(_round_up(tile_b, pack) // pack, 8)
    tbp = min(tbp_cap, max(_round_up(pl.cdiv(Bp, 2), 8), 8))
    tbp = min(tbp, Bp)                          # block == full array for tiny batches
    grid = (pl.cdiv(Bp, tbp),)                  # ragged tail -> partial last block

    out_packed = pl.pallas_call(
        _mlp_packed_kernel,
        out_shape=jax.ShapeDtypeStruct((Bp, pack * out_dim), jnp.float32),
        grid_spec=pltpu.PrefetchScalarGridSpec(
            num_scalar_prefetch=0,
            grid=grid,
            in_specs=[
                # packed activations: one batch tile per grid step (256-lane dense)
                pl.BlockSpec((tbp, pack * in_dim), lambda i: (i, 0)),
                # parameters: constant index_map -> stay VMEM-resident
                pl.BlockSpec(w1p.shape, lambda i: (0, 0)),
                pl.BlockSpec(b1p.shape, lambda i: (0, 0)),
                pl.BlockSpec(w2p.shape, lambda i: (0, 0)),
                pl.BlockSpec(b2p.shape, lambda i: (0, 0)),
            ],
            # 128-lane-wide output tile -> unmasked vst stores
            out_specs=pl.BlockSpec((tbp, pack * out_dim), lambda i: (i, 0)),
        ),
        compiler_params=pltpu.CompilerParams(
            dimension_semantics=("parallel",)),   # megacore sharding on v7x
    )(xp, w1p, b1p, w2p, b2p)

    out = out_packed.reshape(B_pad, out_dim)      # free un-packing reshape
    return out[:B] if B_pad != B else out


if __name__ == "__main__":
    # Shapes consistent with the module's forward:
    #   inputNum=32, hiddenNum=64, outputNum=16; batch=512 exercises the tiled
    #   grid (grid=(2,) so both v7x TCs get work) while staying tiny in memory.
    B, input_num, hidden_num, output_num = 512, 32, 64, 16

    key = jax.random.PRNGKey(0)
    kx, kw1, kb1, kw2, kb2 = jax.random.split(key, 5)

    x = jax.random.normal(kx, (B, input_num), dtype=jnp.float32)

    # Deterministic parameter init (uniform +/- 1/sqrt(fan_in), like nn.Linear).
    lim1 = 1.0 / jnp.sqrt(jnp.float32(input_num))
    lim2 = 1.0 / jnp.sqrt(jnp.float32(hidden_num))
    w1 = jax.random.uniform(kw1, (input_num, hidden_num), jnp.float32, -lim1, lim1)
    b1 = jax.random.uniform(kb1, (hidden_num,), jnp.float32, -lim1, lim1)
    w2 = jax.random.uniform(kw2, (hidden_num, output_num), jnp.float32, -lim2, lim2)
    b2 = jax.random.uniform(kb2, (output_num,), jnp.float32, -lim2, lim2)

    out = jax.block_until_ready(net_relu_forward(x, w1, b1, w2, b2))

    # Pure-JAX reference check
    ref = jnp.maximum(x @ w1 + b1, 0.0) @ w2 + b2
    assert out.shape == (B, output_num)
    assert jnp.allclose(out, ref, atol=1e-5, rtol=1e-5)

    # Tiny, non-8-aligned batch (exercises the <=7-row pad + single-block path).
    out_small = jax.block_until_ready(net_relu_forward(x[:5], w1, b1, w2, b2))
    assert jnp.allclose(out_small, ref[:5], atol=1e-5, rtol=1e-5)

    # Batch not divisible by the tile (exercises the ragged partial last block).
    out_ragged = jax.block_until_ready(net_relu_forward(x[:100], w1, b1, w2, b2))
    assert jnp.allclose(out_ragged, ref[:100], atol=1e-5, rtol=1e-5)

    print("KERNEL_OK")
</pallas_src>

<mosaic_0001>
module attributes {stable_mosaic.version = 11 : i64} {
  func.func @_mlp_packed_kernel(%arg0: i32, %arg1: memref<32x256xf32, #tpu.memory_space<vmem>>, %arg2: memref<256x512xf32, #tpu.memory_space<vmem>>, %arg3: memref<1x512xf32, #tpu.memory_space<vmem>>, %arg4: memref<512x128xf32, #tpu.memory_space<vmem>>, %arg5: memref<1x128xf32, #tpu.memory_space<vmem>>, %arg6: memref<32x128xf32, #tpu.memory_space<vmem>>) attributes {dimension_semantics = [#tpu.dimension_semantics<parallel>], iteration_bounds = array<i64: 2>, scalar_prefetch = 0 : i64, scratch_operands = 0 : i64, tpu.core_type = #tpu.core_type<tc>, window_params = [{transform_indices = @transform_0, window_bounds = array<i64: 32, 256>}, {pipeline_mode = #tpu.pipeline_mode<synchronous>, transform_indices = @transform_1, window_bounds = array<i64: 256, 512>}, {pipeline_mode = #tpu.pipeline_mode<synchronous>, transform_indices = @transform_2, window_bounds = array<i64: 1, 512>}, {pipeline_mode = #tpu.pipeline_mode<synchronous>, transform_indices = @transform_3, window_bounds = array<i64: 512, 128>}, {pipeline_mode = #tpu.pipeline_mode<synchronous>, transform_indices = @transform_4, window_bounds = array<i64: 1, 128>}, {transform_indices = @transform_5, window_bounds = array<i64: 32, 128>}]} {
    %c0 = arith.constant 0 : index
    %c0_0 = arith.constant 0 : index
    %0 = vector.load %arg1[%c0, %c0_0] : memref<32x256xf32, #tpu.memory_space<vmem>>, vector<32x256xf32>
    %c0_1 = arith.constant 0 : index
    %c0_2 = arith.constant 0 : index
    %1 = vector.load %arg2[%c0_1, %c0_2] : memref<256x512xf32, #tpu.memory_space<vmem>>, vector<256x512xf32>
    %cst = arith.constant dense<0.000000e+00> : vector<32x512xf32>
    %2 = tpu.matmul %0, %1, %cst {dimension_numbers = #tpu.dot_dimension_numbers<[1], [0], [0], [1], [0, 0, 1, 1], [], []>} : vector<32x256xf32>, vector<256x512xf32>, vector<32x512xf32> -> vector<32x512xf32>
    %c0_3 = arith.constant 0 : index
    %c0_4 = arith.constant 0 : index
    %3 = vector.load %arg3[%c0_3, %c0_4] : memref<1x512xf32, #tpu.memory_space<vmem>>, vector<1x512xf32>
    %4 = vector.broadcast %3 : vector<1x512xf32> to vector<32x512xf32>
    %5 = arith.addf %2, %4 : vector<32x512xf32>
    %cst_5 = arith.constant 0.000000e+00 : f32
    %6 = vector.broadcast %cst_5 : f32 to vector<32x512xf32>
    %7 = arith.maximumf %5, %6 : vector<32x512xf32>
    %c0_6 = arith.constant 0 : index
    %c0_7 = arith.constant 0 : index
    %8 = vector.load %arg4[%c0_6, %c0_7] : memref<512x128xf32, #tpu.memory_space<vmem>>, vector<512x128xf32>
    %cst_8 = arith.constant dense<0.000000e+00> : vector<32x128xf32>
    %9 = tpu.matmul %7, %8, %cst_8 {dimension_numbers = #tpu.dot_dimension_numbers<[1], [0], [0], [1], [0, 0, 1, 1], [], []>} : vector<32x512xf32>, vector<512x128xf32>, vector<32x128xf32> -> vector<32x128xf32>
    %c0_9 = arith.constant 0 : index
    %c0_10 = arith.constant 0 : index
    %10 = vector.load %arg5[%c0_9, %c0_10] : memref<1x128xf32, #tpu.memory_space<vmem>>, vector<1x128xf32>
    %11 = vector.broadcast %10 : vector<1x128xf32> to vector<32x128xf32>
    %12 = arith.addf %9, %11 : vector<32x128xf32>
    %c0_11 = arith.constant 0 : index
    %c0_12 = arith.constant 0 : index
    %13 = vector.load %arg6[%c0_11, %c0_12] : memref<32x128xf32, #tpu.memory_space<vmem>>, vector<32x128xf32>
    tpu.vector_store %arg6[%c0_11, %c0_12], %12 {strides = array<i32>} : memref<32x128xf32, #tpu.memory_space<vmem>>, vector<32x128xf32>,
    return
  }
  func.func @transform_0(%arg0: i32) -> (i32, i32) {
    %c0_i32 = arith.constant 0 : i32
    %c0_i32_0 = arith.constant 0 : i32
    return %arg0, %c0_i32 : i32, i32
  }
  func.func @transform_1(%arg0: i32) -> (i32, i32) {
    %c0_i32 = arith.constant 0 : i32
    %c0_i32_0 = arith.constant 0 : i32
    %c0_i32_1 = arith.constant 0 : i32
    return %c0_i32, %c0_i32_0 : i32, i32
  }
  func.func @transform_2(%arg0: i32) -> (i32, i32) {
    %c0_i32 = arith.constant 0 : i32
    %c0_i32_0 = arith.constant 0 : i32
    %c0_i32_1 = arith.constant 0 : i32
    return %c0_i32, %c0_i32_0 : i32, i32
  }
  func.func @transform_3(%arg0: i32) -> (i32, i32) {
    %c0_i32 = arith.constant 0 : i32
    %c0_i32_0 = arith.constant 0 : i32
    %c0_i32_1 = arith.constant 0 : i32
    return %c0_i32, %c0_i32_0 : i32, i32
  }
  func.func @transform_4(%arg0: i32) -> (i32, i32) {
    %c0_i32 = arith.constant 0 : i32
    %c0_i32_0 = arith.constant 0 : i32
    %c0_i32_1 = arith.constant 0 : i32
    return %c0_i32, %c0_i32_0 : i32, i32
  }
  func.func @transform_5(%arg0: i32) -> (i32, i32) {
    %c0_i32 = arith.constant 0 : i32
    %c0_i32_0 = arith.constant 0 : i32
    return %arg0, %c0_i32 : i32, i32
  }
}

</mosaic_0001>

<llo_original>
// kernel: tile.13
$region0: #{tile.13}
  #allocation0 [shape = 's32[1]{0}', space=sflag, size = 0x4, scoped, tag = 'scoped memory for tile.13']
  %s0 = inlined_call_operand.vmem [shape: f32[64], index: 0, kind: input, shape index: {}]
  %s1 = inlined_call_operand.vmem [shape: f32[8,64], index: 1, kind: output, shape index: {}]
  // Predicated region
  $region2: #{tile.13} parent=0 // pred_check
    _
  $region3: #{tile.13} parent=0 // pred_check_branch
    %3 = sbr.rel (0) target = $region5
  $region4: #{tile.13} parent=0 // pred_region
    _
  $region5: #{tile.13} parent=0 // pred_fallthru
    _
  %v4 = vld [vmem:[%s0] ss:$0 sm:$0xff]
  %5 = vst [vmem:[%s1] sm:$0xff] %v4

// kernel: tile.14
$region0: #{tile.14}
  %s0 = inlined_call_operand.vmem [shape: f32[8,64], index: 0, kind: input, shape index: {}]
  %s1 = inlined_call_operand.vmem [shape: f32[1,512], index: 1, kind: output, shape index: {}]
  $region1: #{tile.14} parent=0
    #allocation0 [shape = 'u8[16384]{0}', space=vmem, size = 0x4000, scoped, tag = 'scoped mem for output reshape']
    %v2 = vld [vmem:[%s0] ss:$2 sm:$0xf]
    %vm3 = vcmask 523264
    %4 = vst.msk [vmem:[#allocation0] ss:$8 sm:$0xf] %vm3, %v2
    %s5 = scalar_lea.vmem %s0, 1
    %v6 = vld [vmem:[%s5] ss:$2 sm:$0xf]
    %7 = vrot.lane.b32.xlu0 %v6, 64
    %v8 = vpop.permute.xlu0 %7
    %vm9 = vcmask 1048064
    %10 = vst.msk [vmem:[#allocation0] ss:$8 sm:$0xf] %vm9, %v8
    %s12 = ssub.s32 2, 1
    %v13 = vld [vmem:[#allocation0] sm:%s12]
    %s15 = ssub.s32 2, 1
    %16 = vst [vmem:[%s1] sm:%s15] %v13
    %s17 = scalar_lea.vmem [#allocation0], 8
    %v18 = vld [vmem:[%s17] sm:%s12]
    %s20 = ssub.s32 2, 1
    %s21 = scalar_lea.vmem %s1, 1
    %22 = vst [vmem:[%s21] sm:%s20] %v18
    %s23 = scalar_lea.vmem [#allocation0], 16
    %v24 = vld [vmem:[%s23] sm:%s12]
    %s26 = ssub.s32 2, 1
    %s27 = scalar_lea.vmem %s1, 2
    %28 = vst [vmem:[%s27] sm:%s26] %v24
    %s29 = scalar_lea.vmem [#allocation0], 24
    %v30 = vld [vmem:[%s29] sm:%s12]
    %s32 = ssub.s32 2, 1
    %s33 = scalar_lea.vmem %s1, 3
    %34 = vst [vmem:[%s33] sm:%s32] %v30

// kernel: tile.18
$region0: #{tile.18}
  #allocation0 [shape = 's32[1]{0}', space=sflag, size = 0x4, scoped, tag = 'scoped memory for tile.18']
  %s0 = inlined_call_operand.vmem [shape: f32[16], index: 0, kind: input, shape index: {}]
  %s1 = inlined_call_operand.vmem [shape: f32[8,16], index: 1, kind: output, shape index: {}]
  // Predicated region
  $region2: #{tile.18} parent=0 // pred_check
    _
  $region3: #{tile.18} parent=0 // pred_check_branch
    %3 = sbr.rel (0) target = $region5
  $region4: #{tile.18} parent=0 // pred_region
    _
  $region5: #{tile.18} parent=0 // pred_fallthru
    _
  %v4 = vld [vmem:[%s0] ss:$0 sm:$0xff]
  %5 = vst [vmem:[%s1] sm:$0xff] %v4

// kernel: tile.19
$region0: #{tile.19}
  %s0 = inlined_call_operand.vmem [shape: f32[8,16], index: 0, kind: input, shape index: {}]
  %s1 = inlined_call_operand.vmem [shape: f32[1,128], index: 1, kind: output, shape index: {}]
  $region1: #{tile.19} parent=0
    #allocation0 [shape = 'u8[4096]{0}', space=vmem, size = 0x1000, scoped, tag = 'scoped mem for output reshape']
    %v2 = vld [vmem:[%s0] sm:$0x1]
    %vm3 = vcmask 130048
    %4 = vst.msk [vmem:[#allocation0] sm:$0x1] %vm3, %v2
    %s5 = scalar_lea.vmem %s0, 7
    %v6 = vld [vmem:[%s5] sm:$0x1]
    %7 = vrot.lane.b32.xlu0 %v6, 112
    %v8 = vpop.permute.xlu0 %7
    %vm9 = vcmask 1048448
    %10 = vst.msk [vmem:[#allocation0] sm:$0x1] %vm9, %v8
    %s11 = scalar_lea.vmem %s0, 6
    %v12 = vld [vmem:[%s11] sm:$0x1]
    %13 = vrot.lane.b32.xlu0 %v12, 96
    %v14 = vpop.permute.xlu0 %13
    %vm15 = vcmask 917248
    %16 = vst.msk [vmem:[#allocation0] sm:$0x1] %vm15, %v14
    %s17 = scalar_lea.vmem %s0, 5
    %v18 = vld [vmem:[%s17] sm:$0x1]
    %19 = vrot.lane.b32.xlu0 %v18, 80
    %v20 = vpop.permute.xlu0 %19
    %vm21 = vcmask 786048
    %22 = vst.msk [vmem:[#allocation0] sm:$0x1] %vm21, %v20
    %s23 = scalar_lea.vmem %s0, 4
    %v24 = vld [vmem:[%s23] sm:$0x1]
    %25 = vrot.lane.b32.xlu0 %v24, 64
    %v26 = vpop.permute.xlu0 %25
    %vm27 = vcmask 654848
    %28 = vst.msk [vmem:[#allocation0] sm:$0x1] %vm27, %v26
    %s29 = scalar_lea.vmem %s0, 3
    %v30 = vld [vmem:[%s29] sm:$0x1]
    %31 = vrot.lane.b32.xlu0 %v30, 48
    %v32 = vpop.permute.xlu0 %31
    %vm33 = vcmask 523648
    %34 = vst.msk [vmem:[#allocation0] sm:$0x1] %vm33, %v32
    %s35 = scalar_lea.vmem %s0, 2
    %v36 = vld [vmem:[%s35] sm:$0x1]
    %37 = vrot.lane.b32.xlu0 %v36, 32
    %v38 = vpop.permute.xlu0 %37
    %vm39 = vcmask 392448
    %40 = vst.msk [vmem:[#allocation0] sm:$0x1] %vm39, %v38
    %s41 = scalar_lea.vmem %s0, 1
    %v42 = vld [vmem:[%s41] sm:$0x1]
    %43 = vrot.lane.b32.xlu0 %v42, 16
    %v44 = vpop.permute.xlu0 %43
    %vm45 = vcmask 261248
    %46 = vst.msk [vmem:[#allocation0] sm:$0x1] %vm45, %v44
    %s48 = ssub.s32 2, 1
    %v49 = vld [vmem:[#allocation0] sm:%s48]
    %s51 = ssub.s32 2, 1
    %52 = vst [vmem:[%s1] sm:%s51] %v49

// kernel: net_relu_forward.1
$region0: #{net_relu_forward.1}
  #allocation0 [shape = 'u32[]', space=smem, size = 0x4, offset = 0x4, fixed_abs, tag = 'smem constant byte address 0x4 - core index']
  #allocation1 [shape = 'u32[72,128]{1,0:T(1,128)}', space=vmem, size = 0x9000, scoped, tag = 'internal scratch']
  %s0 = inlined_call_operand.vmem [shape: f32[64,256], index: 0, kind: input, shape index: {}]
  %s1 = inlined_call_operand.vmem [shape: f32[256,512], index: 1, kind: input, shape index: {}]
  %s2 = inlined_call_operand.vmem [shape: f32[1,512], index: 2, kind: input, shape index: {}]
  %s3 = inlined_call_operand.vmem [shape: f32[512,128], index: 3, kind: input, shape index: {}]
  %s4 = inlined_call_operand.vmem [shape: f32[1,128], index: 4, kind: input, shape index: {}]
  %s5 = inlined_call_operand.vmem [shape: f32[64,128], index: 5, kind: output, shape index: {}]
  %s6 = sld [smem:[#allocation0]]
  $region53: #{net_relu_forward.1} parent=0
    _
  %s8 = ssub.s32 1, %s6
  %s9 = scalar_select 0, %s8, %s6
  loop: start=0, step=1, limit=4
  $region2: #{net_relu_forward.1} parent=0 // loop_pre_header
    _
  $region3: #{net_relu_forward.1} parent=0 // loop_header
    %s11 = sphi 0, %s15
    %p12 = scmp.ge.s32.totalorder %s11, 4
    %s21 = sphi 0, %s23
    %s24 = sphi 0, %s21
    %s25 = sphi 0, %s24
    %s41 = sphi 0, %s25
    %s45 = sphi 0, %s45
    %s47 = sphi 0, %s45
    %s48 = sphi 0, %s47
    %s62 = sphi 0, %s48
    %s66 = sphi 0, %s66
    %s68 = sphi 0, %s66
    %s69 = sphi 0, %s68
    %s83 = sphi 0, %s69
    %s87 = sphi 0, %s87
    %s89 = sphi 0, %s87
    %s90 = sphi 0, %s89
    %s104 = sphi 0, %s90
    %s108 = sphi 0, %s108
    %s110 = sphi 0, %s108
    %s111 = sphi 0, %s110
    %s125 = sphi 0, %s111
    %s131 = sphi 0, %s133
    %s134 = sphi 0, %s131
    %s135 = sphi 0, %s134
    %s151 = sphi 0, %s135
  $region4: #{net_relu_forward.1} parent=0 // loop_header_branch
    %14 = sbr.rel (%p12) target = $region8
  $region5: #{net_relu_forward.1} parent=0 // loop_body
    %s16 = ssub.s32 %s11, 1
    %s17 = ssub.s32 %s11, 2
    %s18 = sadd.s32 %s11, 1
    %s19 = ssub.s32 %s11, %s18
    %p20 = scmp.eq.s32.totalorder %s19, 0
    %s22 = sadd.s32 %s21, 1
    %s23 = scalar_select %p20, %s21, %s22
    %p26 = pneg %p20
    %p27 = scmp.eq.s32.totalorder %s11, 1
    %p28 = por %p26, %p27
    %p29 = scmp.ne.s32.totalorder %s21, %s24
    %p30 = scmp.eq.s32.totalorder %s11, 0
    %p31 = por %p29, %p30
    %p32 = scmp.ne.s32.totalorder %s21, %s24
    %p33 = scmp.eq.s32.totalorder %s16, 1
    %p34 = por %p32, %p33
    %p35 = scmp.ne.s32.totalorder %s24, %s25
    %p36 = scmp.eq.s32.totalorder %s16, 0
    %p37 = por %p35, %p36
    %p38 = scmp.ne.s32.totalorder %s24, %s25
    %p39 = scmp.eq.s32.totalorder %s17, 1
    %p40 = por %p38, %p39
    %p42 = scmp.ne.s32.totalorder %s25, %s41
    %p43 = scmp.eq.s32.totalorder %s17, 0
    %p44 = por %p42, %p43
    %s46 = sadd.s32 %s45, 1
    %p49 = scmp.eq.s32.totalorder %s11, 1
    %p50 = scmp.ne.s32.totalorder %s45, %s47
    %p51 = scmp.eq.s32.totalorder %s11, 0
    %p52 = por %p50, %p51
    %p53 = scmp.ne.s32.totalorder %s45, %s47
    %p54 = scmp.eq.s32.totalorder %s16, 1
    %p55 = por %p53, %p54
    %p56 = scmp.ne.s32.totalorder %s47, %s48
    %p57 = scmp.eq.s32.totalorder %s16, 0
    %p58 = por %p56, %p57
    %p59 = scmp.ne.s32.totalorder %s47, %s48
    %p60 = scmp.eq.s32.totalorder %s17, 1
    %p61 = por %p59, %p60
    %p63 = scmp.ne.s32.totalorder %s48, %s62
    %p64 = scmp.eq.s32.totalorder %s17, 0
    %p65 = por %p63, %p64
    %s67 = sadd.s32 %s66, 1
    %p70 = scmp.eq.s32.totalorder %s11, 1
    %p71 = scmp.ne.s32.totalorder %s66, %s68
    %p72 = scmp.eq.s32.totalorder %s11, 0
    %p73 = por %p71, %p72
    %p74 = scmp.ne.s32.totalorder %s66, %s68
    %p75 = scmp.eq.s32.totalorder %s16, 1
    %p76 = por %p74, %p75
    %p77 = scmp.ne.s32.totalorder %s68, %s69
    %p78 = scmp.eq.s32.totalorder %s16, 0
    %p79 = por %p77, %p78
    %p80 = scmp.ne.s32.totalorder %s68, %s69
    %p81 = scmp.eq.s32.totalorder %s17, 1
    %p82 = por %p80, %p81
    %p84 = scmp.ne.s32.totalorder %s69, %s83
    %p85 = scmp.eq.s32.totalorder %s17, 0
    %p86 = por %p84, %p85
    %s88 = sadd.s32 %s87, 1
    %p91 = scmp.eq.s32.totalorder %s11, 1
    %p92 = scmp.ne.s32.totalorder %s87, %s89
    %p93 = scmp.eq.s32.totalorder %s11, 0
    %p94 = por %p92, %p93
    %p95 = scmp.ne.s32.totalorder %s87, %s89
    %p96 = scmp.eq.s32.totalorder %s16, 1
    %p97 = por %p95, %p96
    %p98 = scmp.ne.s32.totalorder %s89, %s90
    %p99 = scmp.eq.s32.totalorder %s16, 0
    %p100 = por %p98, %p99
    %p101 = scmp.ne.s32.totalorder %s89, %s90
    %p102 = scmp.eq.s32.totalorder %s17, 1
    %p103 = por %p101, %p102
    %p105 = scmp.ne.s32.totalorder %s90, %s104
    %p106 = scmp.eq.s32.totalorder %s17, 0
    %p107 = por %p105, %p106
    %s109 = sadd.s32 %s108, 1
    %p112 = scmp.eq.s32.totalorder %s11, 1
    %p113 = scmp.ne.s32.totalorder %s108, %s110
    %p114 = scmp.eq.s32.totalorder %s11, 0
    %p115 = por %p113, %p114
    %p116 = scmp.ne.s32.totalorder %s108, %s110
    %p117 = scmp.eq.s32.totalorder %s16, 1
    %p118 = por %p116, %p117
    %p119 = scmp.ne.s32.totalorder %s110, %s111
    %p120 = scmp.eq.s32.totalorder %s16, 0
    %p121 = por %p119, %p120
    %p122 = scmp.ne.s32.totalorder %s110, %s111
    %p123 = scmp.eq.s32.totalorder %s17, 1
    %p124 = por %p122, %p123
    %p126 = scmp.ne.s32.totalorder %s111, %s125
    %p127 = scmp.eq.s32.totalorder %s17, 0
    %p128 = por %p126, %p127
    %s129 = ssub.s32 %s11, %s18
    %p130 = scmp.eq.s32.totalorder %s129, 0
    %s132 = sadd.s32 %s131, 1
    %s133 = scalar_select %p130, %s131, %s132
    %p136 = pneg %p130
    %p137 = scmp.eq.s32.totalorder %s11, 1
    %p138 = por %p136, %p137
    %p139 = scmp.ne.s32.totalorder %s131, %s134
    %p140 = scmp.eq.s32.totalorder %s11, 0
    %p141 = por %p139, %p140
    %p142 = scmp.ne.s32.totalorder %s131, %s134
    %p143 = scmp.eq.s32.totalorder %s16, 1
    %p144 = por %p142, %p143
    %p145 = scmp.ne.s32.totalorder %s134, %s135
    %p146 = scmp.eq.s32.totalorder %s16, 0
    %p147 = por %p145, %p146
    %p148 = scmp.ne.s32.totalorder %s134, %s135
    %p149 = scmp.eq.s32.totalorder %s17, 1
    %p150 = por %p148, %p149
    %p152 = scmp.ne.s32.totalorder %s135, %s151
    %p153 = scmp.eq.s32.totalorder %s17, 0
    %p154 = por %p152, %p153
    %p155 = scmp.le.s32.totalorder 1, %s11
    %p156 = scmp.lt.s32.totalorder %s11, 3
    %p157 = pnand %p155, %p156
    %p158 = pneg %p157
    // Predicated region
    $region9: #{net_relu_forward.1} parent=5 // pred_check
      _
    $region10: #{net_relu_forward.1} parent=5 // pred_check_branch
      %160 = sbr.rel (%p157) target = $region12
    $region11: #{net_relu_forward.1} parent=5 // pred_region
      %s161 = ssub.s32 %s11, 1
      // Predicated region
      $region13: #{net_relu_forward.1} parent=11 // pred_check
        %p162 = pneg %p58
      $region14: #{net_relu_forward.1} parent=11 // pred_check_branch
        %164 = sbr.rel (%p162) target = $region16
      $region15: #{net_relu_forward.1} parent=11 // pred_region
        _
      $region16: #{net_relu_forward.1} parent=11 // pred_fallthru
        _
      // Predicated region
      $region17: #{net_relu_forward.1} parent=11 // pred_check
        %p165 = pneg %p79
      $region18: #{net_relu_forward.1} parent=11 // pred_check_branch
        %167 = sbr.rel (%p165) target = $region20
      $region19: #{net_relu_forward.1} parent=11 // pred_region
        _
      $region20: #{net_relu_forward.1} parent=11 // pred_fallthru
        _
      // Predicated region
      $region21: #{net_relu_forward.1} parent=11 // pred_check
        %p168 = pneg %p100
      $region22: #{net_relu_forward.1} parent=11 // pred_check_branch
        %170 = sbr.rel (%p168) target = $region24
      $region23: #{net_relu_forward.1} parent=11 // pred_region
        _
      $region24: #{net_relu_forward.1} parent=11 // pred_fallthru
        _
      // Predicated region
      $region25: #{net_relu_forward.1} parent=11 // pred_check
        %p171 = pneg %p121
      $region26: #{net_relu_forward.1} parent=11 // pred_check_branch
        %173 = sbr.rel (%p171) target = $region28
      $region27: #{net_relu_forward.1} parent=11 // pred_region
        _
      $region28: #{net_relu_forward.1} parent=11 // pred_fallthru
        _
    $region12: #{net_relu_forward.1} parent=5 // pred_fallthru
      _
    %p174 = scmp.lt.s32.totalorder %s11, 2
    // Predicated region
    $region29: #{net_relu_forward.1} parent=5 // pred_check
      %p175 = pneg %p174
    $region30: #{net_relu_forward.1} parent=5 // pred_check_branch
      %177 = sbr.rel (%p175) target = $region32
    $region31: #{net_relu_forward.1} parent=5 // pred_region
      // Predicated region
      $region33: #{net_relu_forward.1} parent=31 // pred_check
        %p178 = pneg %p31
      $region34: #{net_relu_forward.1} parent=31 // pred_check_branch
        %180 = sbr.rel (%p178) target = $region36
      $region35: #{net_relu_forward.1} parent=31 // pred_region
        %s181 = smul.u32 4, %s11
        %p182 = scmp.lt.s32.totalorder %s181, 7
        %s183 = scalar_select %p182, %s181, 7
        %s184 = smul.addr %s183, 2
        %s185 = smul.addr %s184, 8
        %s186 = scalar_lea.vmem %s0, %s185
        %s187 = smul.u32 4, %s11
      $region36: #{net_relu_forward.1} parent=31 // pred_fallthru
        _
    $region32: #{net_relu_forward.1} parent=5 // pred_fallthru
      _
    %p188 = scmp.le.s32.totalorder 1, %s11
    %p189 = scmp.lt.s32.totalorder %s11, 3
    %p190 = pnand %p188, %p189
    %p191 = pneg %p190
    // Predicated region
    $region37: #{net_relu_forward.1} parent=5 // pred_check
      _
    $region38: #{net_relu_forward.1} parent=5 // pred_check_branch
      %193 = sbr.rel (%p190) target = $region40
    $region39: #{net_relu_forward.1} parent=5 // pred_region
      %s194 = ssub.s32 %s11, 1
      %s195 = smul.u32 4, %s16
      %p196 = scmp.lt.s32.totalorder %s195, 7
      %s197 = scalar_select %p196, %s195, 7
      %s198 = smul.addr %s197, 2
      %s199 = smul.addr %s198, 8
      %s200 = scalar_lea.vmem %s0, %s199
      %p201 = pneg %p37
      %p202 = pneg %p34
      %p203 = pneg %p58
      %p204 = pneg %p55
      %p205 = pneg %p79
      %p206 = pneg %p76
      %p207 = pneg %p100
      %p208 = pneg %p97
      %p209 = pneg %p121
      %p210 = pneg %p118
      %p211 = pneg %p147
      %p212 = pneg %p144
      %s213 = smul.u32 4, %s16
      %p214 = scmp.lt.s32.totalorder %s213, 7
      %s215 = scalar_select %p214, %s213, 7
      %s216 = smul.addr %s215, 8
      %s217 = scalar_lea.vmem %s5, %s216
      %s218 = smul.u32 4, %s16
      %p219 = scmp.lt.s32.totalorder %s218, 7
      %s220 = scalar_select %p219, %s218, 7
      %s221 = smul.addr %s220, 2
      %s222 = smul.addr %s221, 8
      %s223 = scalar_lea.vmem %s0, %s222
      %s224 = smul.u32 4, %s16
      %s225 = smul.u32 4, %s16
      %p226 = scmp.lt.s32.totalorder %s225, 7
      %s227 = scalar_select %p226, %s225, 7
      %s228 = smul.addr %s227, 8
      %s229 = scalar_lea.vmem %s5, %s228
      %s230 = smul.u32 4, %s16
      %v231 = vld [vmem:[%s223] sm:$0xff]
      %v232 = vld [vmem:[%s223 + $0x8] sm:$0xff]
      %v233 = vld [vmem:[%s223 + $0x10] sm:$0xff]
      %v234 = vld [vmem:[%s223 + $0x18] sm:$0xff]
      %v235 = vld [vmem:[%s223 + $0x20] sm:$0xff]
      %v236 = vld [vmem:[%s223 + $0x28] sm:$0xff]
      %v237 = vld [vmem:[%s223 + $0x30] sm:$0xff]
      %v238 = vld [vmem:[%s223 + $0x38] sm:$0xff]
      %v239 = vld [vmem:[%s1] sm:$0xff]
      %v240 = vld [vmem:[%s1 + $0x8] sm:$0xff]
      %v241 = vld [vmem:[%s1 + $0x10] sm:$0xff]
      %v242 = vld [vmem:[%s1 + $0x18] sm:$0xff]
      %v243 = vld [vmem:[%s1 + $0x20] sm:$0xff]
      %v244 = vld [vmem:[%s1 + $0x28] sm:$0xff]
      %v245 = vld [vmem:[%s1 + $0x30] sm:$0xff]
      %v246 = vld [vmem:[%s1 + $0x38] sm:$0xff]
      %v247 = vld [vmem:[%s1 + $0x40] sm:$0xff]
      %v248 = vld [vmem:[%s1 + $0x48] sm:$0xff]
      %v249 = vld [vmem:[%s1 + $0x50] sm:$0xff]
      %v250 = vld [vmem:[%s1 + $0x58] sm:$0xff]
      %v251 = vld [vmem:[%s1 + $0x60] sm:$0xff]
      %v252 = vld [vmem:[%s1 + $0x68] sm:$0xff]
      %v253 = vld [vmem:[%s1 + $0x70] sm:$0xff]
      %v254 = vld [vmem:[%s1 + $0x78] sm:$0xff]
      %v255 = vld [vmem:[%s1 + $0x80] sm:$0xff]
      %v256 = vld [vmem:[%s1 + $0x88] sm:$0xff]
      %v257 = vld [vmem:[%s1 + $0x90] sm:$0xff]
      %v258 = vld [vmem:[%s1 + $0x98] sm:$0xff]
      %v259 = vld [vmem:[%s1 + $0xa0] sm:$0xff]
      %v260 = vld [vmem:[%s1 + $0xa8] sm:$0xff]
      %v261 = vld [vmem:[%s1 + $0xb0] sm:$0xff]
      %v262 = vld [vmem:[%s1 + $0xb8] sm:$0xff]
      %v263 = vld [vmem:[%s1 + $0xc0] sm:$0xff]
      %v264 = vld [vmem:[%s1 + $0xc8] sm:$0xff]
      %v265 = vld [vmem:[%s1 + $0xd0] sm:$0xff]
      %v266 = vld [vmem:[%s1 + $0xd8] sm:$0xff]
      %v267 = vld [vmem:[%s1 + $0xe0] sm:$0xff]
      %v268 = vld [vmem:[%s1 + $0xe8] sm:$0xff]
      %v269 = vld [vmem:[%s1 + $0xf0] sm:$0xff]
      %v270 = vld [vmem:[%s1 + $0xf8] sm:$0xff]
      %v271 = vld [vmem:[%s1 + $0x100] sm:$0xff]
      %v272 = vld [vmem:[%s1 + $0x108] sm:$0xff]
      %v273 = vld [vmem:[%s1 + $0x110] sm:$0xff]
      %v274 = vld [vmem:[%s1 + $0x118] sm:$0xff]
      %v275 = vld [vmem:[%s1 + $0x120] sm:$0xff]
      %v276 = vld [vmem:[%s1 + $0x128] sm:$0xff]
      %v277 = vld [vmem:[%s1 + $0x130] sm:$0xff]
      %v278 = vld [vmem:[%s1 + $0x138] sm:$0xff]
      %v279 = vld [vmem:[%s1 + $0x140] sm:$0xff]
      %v280 = vld [vmem:[%s1 + $0x148] sm:$0xff]
      %v281 = vld [vmem:[%s1 + $0x150] sm:$0xff]
      %v282 = vld [vmem:[%s1 + $0x158] sm:$0xff]
      %v283 = vld [vmem:[%s1 + $0x160] sm:$0xff]
      %v284 = vld [vmem:[%s1 + $0x168] sm:$0xff]
      %v285 = vld [vmem:[%s1 + $0x170] sm:$0xff]
      %v286 = vld [vmem:[%s1 + $0x178] sm:$0xff]
      %v287 = vld [vmem:[%s1 + $0x180] sm:$0xff]
      %v288 = vld [vmem:[%s1 + $0x188] sm:$0xff]
      %v289 = vld [vmem:[%s1 + $0x190] sm:$0xff]
      %v290 = vld [vmem:[%s1 + $0x198] sm:$0xff]
      %v291 = vld [vmem:[%s1 + $0x1a0] sm:$0xff]
      %v292 = vld [vmem:[%s1 + $0x1a8] sm:$0xff]
      %v293 = vld [vmem:[%s1 + $0x1b0] sm:$0xff]
      %v294 = vld [vmem:[%s1 + $0x1b8] sm:$0xff]
      %v295 = vld [vmem:[%s1 + $0x1c0] sm:$0xff]
      %v296 = vld [vmem:[%s1 + $0x1c8] sm:$0xff]
      %v297 = vld [vmem:[%s1 + $0x1d0] sm:$0xff]
      %v298 = vld [vmem:[%s1 + $0x1d8] sm:$0xff]
      %v299 = vld [vmem:[%s1 + $0x1e0] sm:$0xff]
      %v300 = vld [vmem:[%s1 + $0x1e8] sm:$0xff]
      %v301 = vld [vmem:[%s1 + $0x1f0] sm:$0xff]
      %v302 = vld [vmem:[%s1 + $0x1f8] sm:$0xff]
      %v303 = vld [vmem:[%s1 + $0x200] sm:$0xff]
      %v304 = vld [vmem:[%s1 + $0x208] sm:$0xff]
      %v305 = vld [vmem:[%s1 + $0x210] sm:$0xff]
      %v306 = vld [vmem:[%s1 + $0x218] sm:$0xff]
      %v307 = vld [vmem:[%s1 + $0x220] sm:$0xff]
      %v308 = vld [vmem:[%s1 + $0x228] sm:$0xff]
      %v309 = vld [vmem:[%s1 + $0x230] sm:$0xff]
      %v310 = vld [vmem:[%s1 + $0x238] sm:$0xff]
      %v311 = vld [vmem:[%s1 + $0x240] sm:$0xff]
      %v312 = vld [vmem:[%s1 + $0x248] sm:$0xff]
      %v313 = vld [vmem:[%s1 + $0x250] sm:$0xff]
      %v314 = vld [vmem:[%s1 + $0x258] sm:$0xff]
      %v315 = vld [vmem:[%s1 + $0x260] sm:$0xff]
      %v316 = vld [vmem:[%s1 + $0x268] sm:$0xff]
      %v317 = vld [vmem:[%s1 + $0x270] sm:$0xff]
      %v318 = vld [vmem:[%s1 + $0x278] sm:$0xff]
      %v319 = vld [vmem:[%s1 + $0x280] sm:$0xff]
      %v320 = vld [vmem:[%s1 + $0x288] sm:$0xff]
      %v321 = vld [vmem:[%s1 + $0x290] sm:$0xff]
      %v322 = vld [vmem:[%s1 + $0x298] sm:$0xff]
      %v323 = vld [vmem:[%s1 + $0x2a0] sm:$0xff]
      %v324 = vld [vmem:[%s1 + $0x2a8] sm:$0xff]
      %v325 = vld [vmem:[%s1 + $0x2b0] sm:$0xff]
      %v326 = vld [vmem:[%s1 + $0x2b8] sm:$0xff]
      %v327 = vld [vmem:[%s1 + $0x2c0] sm:$0xff]
      %v328 = vld [vmem:[%s1 + $0x2c8] sm:$0xff]
      %v329 = vld [vmem:[%s1 + $0x2d0] sm:$0xff]
      %v330 = vld [vmem:[%s1 + $0x2d8] sm:$0xff]
      %v331 = vld [vmem:[%s1 + $0x2e0] sm:$0xff]
      %v332 = vld [vmem:[%s1 + $0x2e8] sm:$0xff]
      %v333 = vld [vmem:[%s1 + $0x2f0] sm:$0xff]
      %v334 = vld [vmem:[%s1 + $0x2f8] sm:$0xff]
      %v335 = vld [vmem:[%s1 + $0x300] sm:$0xff]
      %v336 = vld [vmem:[%s1 + $0x308] sm:$0xff]
      %v337 = vld [vmem:[%s1 + $0x310] sm:$0xff]
      %v338 = vld [vmem:[%s1 + $0x318] sm:$0xff]
      %v339 = vld [vmem:[%s1 + $0x320] sm:$0xff]
      %v340 = vld [vmem:[%s1 + $0x328] sm:$0xff]
      %v341 = vld [vmem:[%s1 + $0x330] sm:$0xff]
      %v342 = vld [vmem:[%s1 + $0x338] sm:$0xff]
      %v343 = vld [vmem:[%s1 + $0x340] sm:$0xff]
      %v344 = vld [vmem:[%s1 + $0x348] sm:$0xff]
      %v345 = vld [vmem:[%s1 + $0x350] sm:$0xff]
      %v346 = vld [vmem:[%s1 + $0x358] sm:$0xff]
      %v347 = vld [vmem:[%s1 + $0x360] sm:$0xff]
      %v348 = vld [vmem:[%s1 + $0x368] sm:$0xff]
      %v349 = vld [vmem:[%s1 + $0x370] sm:$0xff]
      %v350 = vld [vmem:[%s1 + $0x378] sm:$0xff]
      %v351 = vld [vmem:[%s1 + $0x380] sm:$0xff]
      %v352 = vld [vmem:[%s1 + $0x388] sm:$0xff]
      %v353 = vld [vmem:[%s1 + $0x390] sm:$0xff]
      %v354 = vld [vmem:[%s1 + $0x398] sm:$0xff]
      %v355 = vld [vmem:[%s1 + $0x3a0] sm:$0xff]
      %v356 = vld [vmem:[%s1 + $0x3a8] sm:$0xff]
      %v357 = vld [vmem:[%s1 + $0x3b0] sm:$0xff]
      %v358 = vld [vmem:[%s1 + $0x3b8] sm:$0xff]
      %v359 = vld [vmem:[%s1 + $0x3c0] sm:$0xff]
      %v360 = vld [vmem:[%s1 + $0x3c8] sm:$0xff]
      %v361 = vld [vmem:[%s1 + $0x3d0] sm:$0xff]
      %v362 = vld [vmem:[%s1 + $0x3d8] sm:$0xff]
      %v363 = vld [vmem:[%s1 + $0x3e0] sm:$0xff]
      %v364 = vld [vmem:[%s1 + $0x3e8] sm:$0xff]
      %v365 = vld [vmem:[%s1 + $0x3f0] sm:$0xff]
      %v366 = vld [vmem:[%s1 + $0x3f8] sm:$0xff]
      %v367 = vld [vmem:[%s2] sm:$0xf]
      %v369 = vperm.slane %v367, 0
      %v370 = vperm.slane %v367, 1
      %v371 = vperm.slane %v367, 2
      %v372 = vperm.slane %v367, 3
      %377 = vmatpush.msra.mxu0 %v299
      %378 = vmatpush.msra.mxu0 %v295
      %379 = vmatpush.msra.mxu0 %v291
      %380 = vmatpush.msra.mxu0 %v287
      %381 = vmatpush.msra.mxu0 %v283
      %382 = vmatpush.msra.mxu0 %v279
      %383 = vmatpush.msra.mxu0 %v275
      %384 = vmatpush.msra.mxu0 %v271
      %385 = vmatpush.msra.mxu0 %v267
      %386 = vmatpush.msra.mxu0 %v263
      %387 = vmatpush.msra.mxu0 %v259
      %388 = vmatpush.msra.mxu0 %v255
      %389 = vmatpush.msra.mxu0 %v251
      %390 = vmatpush.msra.mxu0 %v247
      %391 = vmatpush.msra.mxu0 %v243
      %392 = vmatpush.msra.mxu0 %v239
      %393 = vmatmul.f32.gmra.mxu0 %v231
      %v394 = vpop.f32.mrf.mxu0
      %v395 = vadd.f32 %v369, %v394
      %396 = vmatmul.f32.gmra.mxu0 %v233
      %v397 = vpop.f32.mrf.mxu0
      %v398 = vadd.f32 %v369, %v397
      %399 = vmatmul.f32.gmra.mxu0 %v235
      %v400 = vpop.f32.mrf.mxu0
      %v401 = vadd.f32 %v369, %v400
      %402 = vmatmul.f32.gmra.mxu0 %v237
      %v403 = vpop.f32.mrf.mxu0
      %v404 = vadd.f32 %v369, %v403
      %405 = vdwg.mxu0
      %406 = vmatpush.msra.mxu0 %v363
      %407 = vmatpush.msra.mxu0 %v359
      %408 = vmatpush.msra.mxu0 %v355
      %409 = vmatpush.msra.mxu0 %v351
      %410 = vmatpush.msra.mxu0 %v347
      %411 = vmatpush.msra.mxu0 %v343
      %412 = vmatpush.msra.mxu0 %v339
      %413 = vmatpush.msra.mxu0 %v335
      %414 = vmatpush.msra.mxu0 %v331
      %415 = vmatpush.msra.mxu0 %v327
      %416 = vmatpush.msra.mxu0 %v323
      %417 = vmatpush.msra.mxu0 %v319
      %418 = vmatpush.msra.mxu0 %v315
      %419 = vmatpush.msra.mxu0 %v311
      %420 = vmatpush.msra.mxu0 %v307
      %421 = vmatpush.msra.mxu0 %v303
      %422 = vmatmul.f32.gmra.mxu0 %v232
      %v423 = vpop.f32.mrf.mxu0
      %v424 = vadd.f32 %v395, %v423
      %425 = vmatmul.f32.gmra.mxu0 %v234
      %v426 = vpop.f32.mrf.mxu0
      %v427 = vadd.f32 %v398, %v426
      %428 = vmatmul.f32.gmra.mxu0 %v236
      %v429 = vpop.f32.mrf.mxu0
      %v430 = vadd.f32 %v401, %v429
      %431 = vmatmul.f32.gmra.mxu0 %v238
      %v432 = vpop.f32.mrf.mxu0
      %v433 = vadd.f32 %v404, %v432
      %434 = vdwg.mxu0
      %435 = vmatpush.msra.mxu0 %v300
      %436 = vmatpush.msra.mxu0 %v296
      %437 = vmatpush.msra.mxu0 %v292
      %438 = vmatpush.msra.mxu0 %v288
      %439 = vmatpush.msra.mxu0 %v284
      %440 = vmatpush.msra.mxu0 %v280
      %441 = vmatpush.msra.mxu0 %v276
      %442 = vmatpush.msra.mxu0 %v272
      %443 = vmatpush.msra.mxu0 %v268
      %444 = vmatpush.msra.mxu0 %v264
      %445 = vmatpush.msra.mxu0 %v260
      %446 = vmatpush.msra.mxu0 %v256
      %447 = vmatpush.msra.mxu0 %v252
      %448 = vmatpush.msra.mxu0 %v248
      %449 = vmatpush.msra.mxu0 %v244
      %450 = vmatpush.msra.mxu0 %v240
      %451 = vmatmul.f32.gmra.mxu0 %v231
      %v452 = vpop.f32.mrf.mxu0
      %v453 = vadd.f32 %v370, %v452
      %454 = vmatmul.f32.gmra.mxu0 %v233
      %v455 = vpop.f32.mrf.mxu0
      %v456 = vadd.f32 %v370, %v455
      %457 = vmatmul.f32.gmra.mxu0 %v235
      %v458 = vpop.f32.mrf.mxu0
      %v459 = vadd.f32 %v370, %v458
      %460 = vmatmul.f32.gmra.mxu0 %v237
      %v461 = vpop.f32.mrf.mxu0
      %v462 = vadd.f32 %v370, %v461
      %463 = vdwg.mxu0
      %464 = vmatpush.msra.mxu0 %v364
      %465 = vmatpush.msra.mxu0 %v360
      %466 = vmatpush.msra.mxu0 %v356
      %467 = vmatpush.msra.mxu0 %v352
      %468 = vmatpush.msra.mxu0 %v348
      %469 = vmatpush.msra.mxu0 %v344
      %470 = vmatpush.msra.mxu0 %v340
      %471 = vmatpush.msra.mxu0 %v336
      %472 = vmatpush.msra.mxu0 %v332
      %473 = vmatpush.msra.mxu0 %v328
      %474 = vmatpush.msra.mxu0 %v324
      %475 = vmatpush.msra.mxu0 %v320
      %476 = vmatpush.msra.mxu0 %v316
      %477 = vmatpush.msra.mxu0 %v312
      %478 = vmatpush.msra.mxu0 %v308
      %479 = vmatpush.msra.mxu0 %v304
      %480 = vmatmul.f32.gmra.mxu0 %v232
      %v481 = vpop.f32.mrf.mxu0
      %v482 = vadd.f32 %v453, %v481
      %483 = vmatmul.f32.gmra.mxu0 %v234
      %v484 = vpop.f32.mrf.mxu0
      %v485 = vadd.f32 %v456, %v484
      %486 = vmatmul.f32.gmra.mxu0 %v236
      %v487 = vpop.f32.mrf.mxu0
      %v488 = vadd.f32 %v459, %v487
      %489 = vmatmul.f32.gmra.mxu0 %v238
      %v490 = vpop.f32.mrf.mxu0
      %v491 = vadd.f32 %v462, %v490
      %492 = vdwg.mxu0
      %493 = vmatpush.msra.mxu0 %v301
      %494 = vmatpush.msra.mxu0 %v297
      %495 = vmatpush.msra.mxu0 %v293
      %496 = vmatpush.msra.mxu0 %v289
      %497 = vmatpush.msra.mxu0 %v285
      %498 = vmatpush.msra.mxu0 %v281
      %499 = vmatpush.msra.mxu0 %v277
      %500 = vmatpush.msra.mxu0 %v273
      %501 = vmatpush.msra.mxu0 %v269
      %502 = vmatpush.msra.mxu0 %v265
      %503 = vmatpush.msra.mxu0 %v261
      %504 = vmatpush.msra.mxu0 %v257
      %505 = vmatpush.msra.mxu0 %v253
      %506 = vmatpush.msra.mxu0 %v249
      %507 = vmatpush.msra.mxu0 %v245
      %508 = vmatpush.msra.mxu0 %v241
      %509 = vmatmul.f32.gmra.mxu0 %v231
      %v510 = vpop.f32.mrf.mxu0
      %v511 = vadd.f32 %v371, %v510
      %512 = vmatmul.f32.gmra.mxu0 %v233
      %v513 = vpop.f32.mrf.mxu0
      %v514 = vadd.f32 %v371, %v513
      %515 = vmatmul.f32.gmra.mxu0 %v235
      %v516 = vpop.f32.mrf.mxu0
      %v517 = vadd.f32 %v371, %v516
      %518 = vmatmul.f32.gmra.mxu0 %v237
      %v519 = vpop.f32.mrf.mxu0
      %v520 = vadd.f32 %v371, %v519
      %521 = vdwg.mxu0
      %522 = vmatpush.msra.mxu0 %v365
      %523 = vmatpush.msra.mxu0 %v361
      %524 = vmatpush.msra.mxu0 %v357
      %525 = vmatpush.msra.mxu0 %v353
      %526 = vmatpush.msra.mxu0 %v349
      %527 = vmatpush.msra.mxu0 %v345
      %528 = vmatpush.msra.mxu0 %v341
      %529 = vmatpush.msra.mxu0 %v337
      %530 = vmatpush.msra.mxu0 %v333
      %531 = vmatpush.msra.mxu0 %v329
      %532 = vmatpush.msra.mxu0 %v325
      %533 = vmatpush.msra.mxu0 %v321
      %534 = vmatpush.msra.mxu0 %v317
      %535 = vmatpush.msra.mxu0 %v313
      %536 = vmatpush.msra.mxu0 %v309
      %537 = vmatpush.msra.mxu0 %v305
      %538 = vmatmul.f32.gmra.mxu0 %v232
      %v539 = vpop.f32.mrf.mxu0
      %v540 = vadd.f32 %v511, %v539
      %541 = vmatmul.f32.gmra.mxu0 %v234
      %v542 = vpop.f32.mrf.mxu0
      %v543 = vadd.f32 %v514, %v542
      %544 = vmatmul.f32.gmra.mxu0 %v236
      %v545 = vpop.f32.mrf.mxu0
      %v546 = vadd.f32 %v517, %v545
      %547 = vmatmul.f32.gmra.mxu0 %v238
      %v548 = vpop.f32.mrf.mxu0
      %v549 = vadd.f32 %v520, %v548
      %550 = vdwg.mxu0
      %551 = vmatpush.msra.mxu0 %v302
      %552 = vmatpush.msra.mxu0 %v298
      %553 = vmatpush.msra.mxu0 %v294
      %554 = vmatpush.msra.mxu0 %v290
      %555 = vmatpush.msra.mxu0 %v286
      %556 = vmatpush.msra.mxu0 %v282
      %557 = vmatpush.msra.mxu0 %v278
      %558 = vmatpush.msra.mxu0 %v274
      %559 = vmatpush.msra.mxu0 %v270
      %560 = vmatpush.msra.mxu0 %v266
      %561 = vmatpush.msra.mxu0 %v262
      %562 = vmatpush.msra.mxu0 %v258
      %563 = vmatpush.msra.mxu0 %v254
      %564 = vmatpush.msra.mxu0 %v250
      %565 = vmatpush.msra.mxu0 %v246
      %566 = vmatpush.msra.mxu0 %v242
      %567 = vmatmul.f32.gmra.mxu0 %v231
      %v568 = vpop.f32.mrf.mxu0
      %v569 = vadd.f32 %v372, %v568
      %570 = vmatmul.f32.gmra.mxu0 %v233
      %v571 = vpop.f32.mrf.mxu0
      %v572 = vadd.f32 %v372, %v571
      %573 = vmatmul.f32.gmra.mxu0 %v235
      %v574 = vpop.f32.mrf.mxu0
      %v575 = vadd.f32 %v372, %v574
      %576 = vmatmul.f32.gmra.mxu0 %v237
      %v577 = vpop.f32.mrf.mxu0
      %v578 = vadd.f32 %v372, %v577
      %579 = vdwg.mxu0
      %580 = vmatpush.msra.mxu0 %v366
      %581 = vmatpush.msra.mxu0 %v362
      %582 = vmatpush.msra.mxu0 %v358
      %583 = vmatpush.msra.mxu0 %v354
      %584 = vmatpush.msra.mxu0 %v350
      %585 = vmatpush.msra.mxu0 %v346
      %586 = vmatpush.msra.mxu0 %v342
      %587 = vmatpush.msra.mxu0 %v338
      %588 = vmatpush.msra.mxu0 %v334
      %589 = vmatpush.msra.mxu0 %v330
      %590 = vmatpush.msra.mxu0 %v326
      %591 = vmatpush.msra.mxu0 %v322
      %592 = vmatpush.msra.mxu0 %v318
      %593 = vmatpush.msra.mxu0 %v314
      %594 = vmatpush.msra.mxu0 %v310
      %595 = vmatpush.msra.mxu0 %v306
      %596 = vmatmul.f32.gmra.mxu0 %v232
      %v597 = vpop.f32.mrf.mxu0
      %v598 = vadd.f32 %v569, %v597
      %599 = vmatmul.f32.gmra.mxu0 %v234
      %v600 = vpop.f32.mrf.mxu0
      %v601 = vadd.f32 %v572, %v600
      %602 = vmatmul.f32.gmra.mxu0 %v236
      %v603 = vpop.f32.mrf.mxu0
      %v604 = vadd.f32 %v575, %v603
      %605 = vmatmul.f32.gmra.mxu0 %v238
      %v606 = vpop.f32.mrf.mxu0
      %v607 = vadd.f32 %v578, %v606
      %608 = vdwg.mxu0
      %v609 = vmax.f32 %v424, 0.0
      %v610 = vmax.f32 %v482, 0.0
      %v611 = vmax.f32 %v540, 0.0
      %v612 = vmax.f32 %v598, 0.0
      %v613 = vmax.f32 %v427, 0.0
      %v614 = vmax.f32 %v485, 0.0
      %v615 = vmax.f32 %v543, 0.0
      %v616 = vmax.f32 %v601, 0.0
      %v617 = vmax.f32 %v430, 0.0
      %v618 = vmax.f32 %v488, 0.0
      %v619 = vmax.f32 %v546, 0.0
      %v620 = vmax.f32 %v604, 0.0
      %v621 = vmax.f32 %v433, 0.0
      %v622 = vmax.f32 %v491, 0.0
      %v623 = vmax.f32 %v549, 0.0
      %v624 = vmax.f32 %v607, 0.0
      %v625 = vld [vmem:[%s3] sm:$0xff]
      %v626 = vld [vmem:[%s3 + $0x8] sm:$0xff]
      %v627 = vld [vmem:[%s3 + $0x10] sm:$0xff]
      %v628 = vld [vmem:[%s3 + $0x18] sm:$0xff]
      %v629 = vld [vmem:[%s3 + $0x20] sm:$0xff]
      %v630 = vld [vmem:[%s3 + $0x28] sm:$0xff]
      %v631 = vld [vmem:[%s3 + $0x30] sm:$0xff]
      %v632 = vld [vmem:[%s3 + $0x38] sm:$0xff]
      %v633 = vld [vmem:[%s3 + $0x40] sm:$0xff]
      %v634 = vld [vmem:[%s3 + $0x48] sm:$0xff]
      %v635 = vld [vmem:[%s3 + $0x50] sm:$0xff]
      %v636 = vld [vmem:[%s3 + $0x58] sm:$0xff]
      %v637 = vld [vmem:[%s3 + $0x60] sm:$0xff]
      %v638 = vld [vmem:[%s3 + $0x68] sm:$0xff]
      %v639 = vld [vmem:[%s3 + $0x70] sm:$0xff]
      %v640 = vld [vmem:[%s3 + $0x78] sm:$0xff]
      %v641 = vld [vmem:[%s3 + $0x80] sm:$0xff]
      %v642 = vld [vmem:[%s3 + $0x88] sm:$0xff]
      %v643 = vld [vmem:[%s3 + $0x90] sm:$0xff]
      %v644 = vld [vmem:[%s3 + $0x98] sm:$0xff]
      %v645 = vld [vmem:[%s3 + $0xa0] sm:$0xff]
      %v646 = vld [vmem:[%s3 + $0xa8] sm:$0xff]
      %v647 = vld [vmem:[%s3 + $0xb0] sm:$0xff]
      %v648 = vld [vmem:[%s3 + $0xb8] sm:$0xff]
      %v649 = vld [vmem:[%s3 + $0xc0] sm:$0xff]
      %v650 = vld [vmem:[%s3 + $0xc8] sm:$0xff]
      %v651 = vld [vmem:[%s3 + $0xd0] sm:$0xff]
      %v652 = vld [vmem:[%s3 + $0xd8] sm:$0xff]
      %v653 = vld [vmem:[%s3 + $0xe0] sm:$0xff]
      %v654 = vld [vmem:[%s3 + $0xe8] sm:$0xff]
      %v655 = vld [vmem:[%s3 + $0xf0] sm:$0xff]
      %v656 = vld [vmem:[%s3 + $0xf8] sm:$0xff]
      %v657 = vld [vmem:[%s3 + $0x100] sm:$0xff]
      %v658 = vld [vmem:[%s3 + $0x108] sm:$0xff]
      %v659 = vld [vmem:[%s3 + $0x110] sm:$0xff]
      %v660 = vld [vmem:[%s3 + $0x118] sm:$0xff]
      %v661 = vld [vmem:[%s3 + $0x120] sm:$0xff]
      %v662 = vld [vmem:[%s3 + $0x128] sm:$0xff]
      %v663 = vld [vmem:[%s3 + $0x130] sm:$0xff]
      %v664 = vld [vmem:[%s3 + $0x138] sm:$0xff]
      %v665 = vld [vmem:[%s3 + $0x140] sm:$0xff]
      %v666 = vld [vmem:[%s3 + $0x148] sm:$0xff]
      %v667 = vld [vmem:[%s3 + $0x150] sm:$0xff]
      %v668 = vld [vmem:[%s3 + $0x158] sm:$0xff]
      %v669 = vld [vmem:[%s3 + $0x160] sm:$0xff]
      %v670 = vld [vmem:[%s3 + $0x168] sm:$0xff]
      %v671 = vld [vmem:[%s3 + $0x170] sm:$0xff]
      %v672 = vld [vmem:[%s3 + $0x178] sm:$0xff]
      %v673 = vld [vmem:[%s3 + $0x180] sm:$0xff]
      %v674 = vld [vmem:[%s3 + $0x188] sm:$0xff]
      %v675 = vld [vmem:[%s3 + $0x190] sm:$0xff]
      %v676 = vld [vmem:[%s3 + $0x198] sm:$0xff]
      %v677 = vld [vmem:[%s3 + $0x1a0] sm:$0xff]
      %v678 = vld [vmem:[%s3 + $0x1a8] sm:$0xff]
      %v679 = vld [vmem:[%s3 + $0x1b0] sm:$0xff]
      %v680 = vld [vmem:[%s3 + $0x1b8] sm:$0xff]
      %v681 = vld [vmem:[%s3 + $0x1c0] sm:$0xff]
      %v682 = vld [vmem:[%s3 + $0x1c8] sm:$0xff]
      %v683 = vld [vmem:[%s3 + $0x1d0] sm:$0xff]
      %v684 = vld [vmem:[%s3 + $0x1d8] sm:$0xff]
      %v685 = vld [vmem:[%s3 + $0x1e0] sm:$0xff]
      %v686 = vld [vmem:[%s3 + $0x1e8] sm:$0xff]
      %v687 = vld [vmem:[%s3 + $0x1f0] sm:$0xff]
      %v688 = vld [vmem:[%s3 + $0x1f8] sm:$0xff]
      %v689 = vld [vmem:[%s4] sm:$0x1]
      %v691 = vperm.slane %v689, 0
      %693 = vmatpush.msra.mxu0 %v640
      %694 = vmatpush.msra.mxu0 %v639
      %695 = vmatpush.msra.mxu0 %v638
      %696 = vmatpush.msra.mxu0 %v637
      %697 = vmatpush.msra.mxu0 %v636
      %698 = vmatpush.msra.mxu0 %v635
      %699 = vmatpush.msra.mxu0 %v634
      %700 = vmatpush.msra.mxu0 %v633
      %701 = vmatpush.msra.mxu0 %v632
      %702 = vmatpush.msra.mxu0 %v631
      %703 = vmatpush.msra.mxu0 %v630
      %704 = vmatpush.msra.mxu0 %v629
      %705 = vmatpush.msra.mxu0 %v628
      %706 = vmatpush.msra.mxu0 %v627
      %707 = vmatpush.msra.mxu0 %v626
      %708 = vmatpush.msra.mxu0 %v625
      %709 = vmatmul.f32.gmra.mxu0 %v609
      %v710 = vpop.f32.mrf.mxu0
      %v711 = vadd.f32 %v691, %v710
      %712 = vmatmul.f32.gmra.mxu0 %v613
      %v713 = vpop.f32.mrf.mxu0
      %v714 = vadd.f32 %v691, %v713
      %715 = vmatmul.f32.gmra.mxu0 %v617
      %v716 = vpop.f32.mrf.mxu0
      %v717 = vadd.f32 %v691, %v716
      %718 = vmatmul.f32.gmra.mxu0 %v621
      %v719 = vpop.f32.mrf.mxu0
      %v720 = vadd.f32 %v691, %v719
      %721 = vdwg.mxu0
      %722 = vmatpush.msra.mxu0 %v656
      %723 = vmatpush.msra.mxu0 %v655
      %724 = vmatpush.msra.mxu0 %v654
      %725 = vmatpush.msra.mxu0 %v653
      %726 = vmatpush.msra.mxu0 %v652
      %727 = vmatpush.msra.mxu0 %v651
      %728 = vmatpush.msra.mxu0 %v650
      %729 = vmatpush.msra.mxu0 %v649
      %730 = vmatpush.msra.mxu0 %v648
      %731 = vmatpush.msra.mxu0 %v647
      %732 = vmatpush.msra.mxu0 %v646
      %733 = vmatpush.msra.mxu0 %v645
      %734 = vmatpush.msra.mxu0 %v644
      %735 = vmatpush.msra.mxu0 %v643
      %736 = vmatpush.msra.mxu0 %v642
      %737 = vmatpush.msra.mxu0 %v641
      %738 = vmatmul.f32.gmra.mxu0 %v610
      %v739 = vpop.f32.mrf.mxu0
      %v740 = vadd.f32 %v711, %v739
      %741 = vmatmul.f32.gmra.mxu0 %v614
      %v742 = vpop.f32.mrf.mxu0
      %v743 = vadd.f32 %v714, %v742
      %744 = vmatmul.f32.gmra.mxu0 %v618
      %v745 = vpop.f32.mrf.mxu0
      %v746 = vadd.f32 %v717, %v745
      %747 = vmatmul.f32.gmra.mxu0 %v622
      %v748 = vpop.f32.mrf.mxu0
      %v749 = vadd.f32 %v720, %v748
      %750 = vdwg.mxu0
      %751 = vmatpush.msra.mxu0 %v672
      %752 = vmatpush.msra.mxu0 %v671
      %753 = vmatpush.msra.mxu0 %v670
      %754 = vmatpush.msra.mxu0 %v669
      %755 = vmatpush.msra.mxu0 %v668
      %756 = vmatpush.msra.mxu0 %v667
      %757 = vmatpush.msra.mxu0 %v666
      %758 = vmatpush.msra.mxu0 %v665
      %759 = vmatpush.msra.mxu0 %v664
      %760 = vmatpush.msra.mxu0 %v663
      %761 = vmatpush.msra.mxu0 %v662
      %762 = vmatpush.msra.mxu0 %v661
      %763 = vmatpush.msra.mxu0 %v660
      %764 = vmatpush.msra.mxu0 %v659
      %765 = vmatpush.msra.mxu0 %v658
      %766 = vmatpush.msra.mxu0 %v657
      %767 = vmatmul.f32.gmra.mxu0 %v611
      %v768 = vpop.f32.mrf.mxu0
      %v769 = vadd.f32 %v740, %v768
      %770 = vmatmul.f32.gmra.mxu0 %v615
      %v771 = vpop.f32.mrf.mxu0
      %v772 = vadd.f32 %v743, %v771
      %773 = vmatmul.f32.gmra.mxu0 %v619
      %v774 = vpop.f32.mrf.mxu0
      %v775 = vadd.f32 %v746, %v774
      %776 = vmatmul.f32.gmra.mxu0 %v623
      %v777 = vpop.f32.mrf.mxu0
      %v778 = vadd.f32 %v749, %v777
      %779 = vdwg.mxu0
      %780 = vmatpush.msra.mxu0 %v688
      %781 = vmatpush.msra.mxu0 %v687
      %782 = vmatpush.msra.mxu0 %v686
      %783 = vmatpush.msra.mxu0 %v685
      %784 = vmatpush.msra.mxu0 %v684
      %785 = vmatpush.msra.mxu0 %v683
      %786 = vmatpush.msra.mxu0 %v682
      %787 = vmatpush.msra.mxu0 %v681
      %788 = vmatpush.msra.mxu0 %v680
      %789 = vmatpush.msra.mxu0 %v679
      %790 = vmatpush.msra.mxu0 %v678
      %791 = vmatpush.msra.mxu0 %v677
      %792 = vmatpush.msra.mxu0 %v676
      %793 = vmatpush.msra.mxu0 %v675
      %794 = vmatpush.msra.mxu0 %v674
      %795 = vmatpush.msra.mxu0 %v673
      %796 = vmatmul.f32.gmra.mxu0 %v612
      %v797 = vpop.f32.mrf.mxu0
      %v798 = vadd.f32 %v769, %v797
      %799 = vmatmul.f32.gmra.mxu0 %v616
      %v800 = vpop.f32.mrf.mxu0
      %v801 = vadd.f32 %v772, %v800
      %802 = vmatmul.f32.gmra.mxu0 %v620
      %v803 = vpop.f32.mrf.mxu0
      %v804 = vadd.f32 %v775, %v803
      %805 = vmatmul.f32.gmra.mxu0 %v624
      %v806 = vpop.f32.mrf.mxu0
      %v807 = vadd.f32 %v778, %v806
      %808 = vdwg.mxu0
      %809 = vst [vmem:[%s229] sm:$0xff] %v798
      %810 = vst [vmem:[%s229 + $0x8] sm:$0xff] %v801
      %811 = vst [vmem:[%s229 + $0x10] sm:$0xff] %v804
      %812 = vst [vmem:[%s229 + $0x18] sm:$0xff] %v807
      %s813 = smul.u32 4, %s16
      %p814 = scmp.lt.s32.totalorder %s813, 7
      %s815 = scalar_select %p814, %s813, 7
      %s816 = smul.addr %s815, 8
      %s817 = scalar_lea.vmem %s5, %s816
      // Predicated region
      $region41: #{net_relu_forward.1} parent=39 // pred_check
        %p818 = pneg %p144
      $region42: #{net_relu_forward.1} parent=39 // pred_check_branch
        %820 = sbr.rel (%p818) target = $region44
      $region43: #{net_relu_forward.1} parent=39 // pred_region
        %s821 = smul.u32 4, %s16
      $region44: #{net_relu_forward.1} parent=39 // pred_fallthru
        _
    $region40: #{net_relu_forward.1} parent=5 // pred_fallthru
      _
    %p822 = scmp.le.s32.totalorder 2, %s11
    // Predicated region
    $region45: #{net_relu_forward.1} parent=5 // pred_check
      %p823 = pneg %p822
    $region46: #{net_relu_forward.1} parent=5 // pred_check_branch
      %825 = sbr.rel (%p823) target = $region48
    $region47: #{net_relu_forward.1} parent=5 // pred_region
      %s826 = ssub.s32 %s11, 2
      // Predicated region
      $region49: #{net_relu_forward.1} parent=47 // pred_check
        %p827 = pneg %p150
      $region50: #{net_relu_forward.1} parent=47 // pred_check_branch
        %829 = sbr.rel (%p827) target = $region52
      $region51: #{net_relu_forward.1} parent=47 // pred_region
        %s830 = smul.u32 4, %s17
        %p831 = scmp.lt.s32.totalorder %s830, 7
        %s832 = scalar_select %p831, %s830, 7
        %s833 = smul.addr %s832, 8
        %s834 = scalar_lea.vmem %s5, %s833
      $region52: #{net_relu_forward.1} parent=47 // pred_fallthru
        _
    $region48: #{net_relu_forward.1} parent=5 // pred_fallthru
      _
  $region6: #{net_relu_forward.1} parent=0 // loop_footer
    %s15 = sadd.s32 1, %s11
  $region7: #{net_relu_forward.1} parent=0 // loop_footer_branch
    %10 = sbr.rel target = $region3
  $region8: #{net_relu_forward.1} parent=0 // loop_exit
    _

</llo_original>
